<compile_context>
chip_gen: v7x
topology: tpu7x:2x2x1
jax: 0.10.0
libtpu: 0.0.40
codegen_flags: <defaults>
</compile_context>

<pallas_src>
import jax
import jax.numpy as jnp
from jax.experimental import pallas as pl
from jax.experimental.pallas import tpu as pltpu


def _round_up(x, m):
    return ((x + m - 1) // m) * m


def residual_block_kernel(x_ref, w1_ref, b1_ref, w2_ref, b2_ref, o_ref):
    # Weights are pre-transposed to [in, out]: native [M,K]x[K,N] MXU contraction,
    # bf16 operands, f32 accumulation.
    h = jnp.dot(x_ref[...].astype(jnp.bfloat16), w1_ref[...],
                preferred_element_type=jnp.float32)
    h = jnp.maximum(h + b1_ref[...], 0.0)
    # TODO(synk): training-mode Dropout(p=0.1) would use pltpu.prng_seed +
    # pltpu.prng_random_bits; eval-mode dropout is the identity, implemented here.
    h = jnp.dot(h.astype(jnp.bfloat16), w2_ref[...],
                preferred_element_type=jnp.float32)
    h = jnp.maximum(h + b2_ref[...], 0.0)
    # Residual add in f32; re-read x_ref at the point of use (keeps live ranges short,
    # the tile is already resident in VMEM).
    o_ref[...] = (x_ref[...].astype(jnp.float32) + h).astype(o_ref.dtype)


def prepare_residual_block_params(w1, b1, w2, b2, *, weight_dtype=jnp.bfloat16):
    """One-time prep from PyTorch [out, in] layout.

    Transpose to [in, out] and cast to bf16 (transpose is free here -- the cast
    already materializes a copy).  Biases stay f32 for the elementwise epilogue.
    """
    w1_t = jnp.asarray(w1).T.astype(weight_dtype)
    w2_t = jnp.asarray(w2).T.astype(weight_dtype)
    b1_2d = jnp.asarray(b1).reshape(1, -1).astype(jnp.float32)
    b2_2d = jnp.asarray(b2).reshape(1, -1).astype(jnp.float32)
    return w1_t, b1_2d, w2_t, b2_2d


def _choose_block_b(B, block_b):
    # Row tile: multiple of 8 (sublane), capped at the (rounded-up) batch.
    block_b = _round_up(max(8, min(block_b, _round_up(B, 8))), 8)
    # Aim for >= ~6 grid steps (>= 3 per TensorCore on a 2-TC v7x) so DMA/writeback
    # pipelines behind compute; keep a 128-row floor (fills the MXU on all gens).
    while block_b > 128 and (B + block_b - 1) // block_b < 6:
        block_b = _round_up(block_b // 2, 8)
    return block_b


def residual_block(x, w1_t, b1_2d, w2_t, b2_2d, *, block_b=256):
    """x: [B, F] f32; w1_t, w2_t: [F, F] pre-transposed ([in, out], bf16);
    b1_2d, b2_2d: [1, F] f32.  Use prepare_residual_block_params() once for weights."""
    B, F = x.shape
    assert w1_t.shape == (F, F) and w2_t.shape == (F, F)
    assert F % 128 == 0, "feature dim must be a multiple of the 128-lane vreg width"

    block_b = _choose_block_b(B, block_b)
    grid = (pl.cdiv(B, block_b),)  # partial final block: OOB rows are dropped on store

    # Scoped-VMEM budget: single-buffered resident weights + double-buffered x/out
    # tiles + f32 intermediates + biases, with headroom; capped at ~80% of this
    # generation's VMEM capacity (v7x has 64 MiB/TC vs 128 MiB on v5e/v6e).
    wbytes = jnp.dtype(w1_t.dtype).itemsize
    est = (
        2 * F * F * wbytes                      # W1, W2 resident, single-buffered
        + 2 * block_b * F * x.dtype.itemsize    # x tile, double-buffered
        + 2 * block_b * F * x.dtype.itemsize    # out tile, double-buffered
        + 3 * block_b * F * 4                   # f32/bf16 intermediates in-kernel
        + 2 * 2 * 8 * F * 4                     # biases (sublane-padded), double-buffered
    )
    try:
        cap = int(0.8 * pltpu.get_tpu_info().vmem_capacity_bytes)
    except Exception:
        cap = 48 << 20  # conservative fallback (safe on v7x)
    vmem_limit = min(cap, max(int(1.25 * est) + (2 << 20), 32 << 20))

    return pl.pallas_call(
        residual_block_kernel,
        out_shape=jax.ShapeDtypeStruct((B, F), x.dtype),
        grid_spec=pltpu.PrefetchScalarGridSpec(
            num_scalar_prefetch=0,
            grid=grid,
            in_specs=[
                # x tile streams over batch (default double-buffered).
                pl.BlockSpec((block_b, F), lambda i: (i, 0)),
                # W1 / W2: constant block -> resident; single-buffer to halve footprint.
                pl.BlockSpec((F, F), lambda i: (0, 0), pipeline_mode=pl.Buffered(1)),
                pl.BlockSpec((1, F), lambda i: (0, 0)),
                pl.BlockSpec((F, F), lambda i: (0, 0), pipeline_mode=pl.Buffered(1)),
                pl.BlockSpec((1, F), lambda i: (0, 0)),
            ],
            out_specs=pl.BlockSpec((block_b, F), lambda i: (i, 0)),
        ),
        compiler_params=pltpu.CompilerParams(
            # Batch tiles shard across TensorCores (try pltpu.CORE_PARALLEL if a
            # profile shows one TC idle on v7x).
            dimension_semantics=("parallel",),
            vmem_limit_bytes=vmem_limit,
        ),
    )(x, w1_t, b1_2d, w2_t, b2_2d)


def _init_linear_params(key, in_features, out_features):
    """Deterministic init mimicking torch.nn.Linear defaults (PyTorch [out, in] layout)."""
    kw, kb = jax.random.split(key)
    bound = 1.0 / jnp.sqrt(in_features)
    w = jax.random.uniform(kw, (out_features, in_features), jnp.float32,
                           minval=-bound, maxval=bound)
    b = jax.random.uniform(kb, (out_features,), jnp.float32,
                           minval=-bound, maxval=bound)
    return w, b


if __name__ == "__main__":
    key = jax.random.PRNGKey(0)
    k_x, k_l1, k_l2 = jax.random.split(key, 3)

    # Non-divisible batch exercises the partial final block (no pad/slice HBM passes).
    B, F = 300, 256
    x = jax.random.normal(k_x, (B, F), jnp.float32)
    w1, b1 = _init_linear_params(k_l1, F, F)
    w2, b2 = _init_linear_params(k_l2, F, F)

    # One-time weight prep (transpose + bf16 cast) outside the per-call path.
    w1_t, b1_2d, w2_t, b2_2d = prepare_residual_block_params(w1, b1, w2, b2)

    out = jax.block_until_ready(
        residual_block(x, w1_t, b1_2d, w2_t, b2_2d, block_b=256))

    # Pure-JAX reference with the same precision policy (bf16 operands / f32 accum,
    # f32 residual), eval-mode dropout == identity.
    h = jnp.dot(x.astype(jnp.bfloat16), w1_t, preferred_element_type=jnp.float32)
    h = jnp.maximum(h + b1_2d, 0.0)
    h = jnp.dot(h.astype(jnp.bfloat16), w2_t, preferred_element_type=jnp.float32)
    h = jnp.maximum(h + b2_2d, 0.0)
    ref = x + h

    assert out.shape == (B, F)
    assert jnp.allclose(out, ref, atol=2e-3, rtol=2e-3), "mismatch vs JAX reference"
    print("KERNEL_OK")
</pallas_src>

<mosaic_0001>
module attributes {stable_mosaic.version = 11 : i64} {
  func.func @residual_block_kernel(%arg0: i32, %arg1: memref<128x256xf32, #tpu.memory_space<vmem>>, %arg2: memref<256x256xbf16, #tpu.memory_space<vmem>>, %arg3: memref<1x256xf32, #tpu.memory_space<vmem>>, %arg4: memref<256x256xbf16, #tpu.memory_space<vmem>>, %arg5: memref<1x256xf32, #tpu.memory_space<vmem>>, %arg6: memref<128x256xf32, #tpu.memory_space<vmem>>) attributes {dimension_semantics = [#tpu.dimension_semantics<parallel>], iteration_bounds = array<i64: 3>, scalar_prefetch = 0 : i64, scratch_operands = 0 : i64, tpu.core_type = #tpu.core_type<tc>, window_params = [{transform_indices = @transform_0, window_bounds = array<i64: 128, 256>}, {pipeline_mode = #tpu.pipeline_mode<synchronous>, transform_indices = @transform_1, window_bounds = array<i64: 256, 256>}, {pipeline_mode = #tpu.pipeline_mode<synchronous>, transform_indices = @transform_2, window_bounds = array<i64: 1, 256>}, {pipeline_mode = #tpu.pipeline_mode<synchronous>, transform_indices = @transform_3, window_bounds = array<i64: 256, 256>}, {pipeline_mode = #tpu.pipeline_mode<synchronous>, transform_indices = @transform_4, window_bounds = array<i64: 1, 256>}, {transform_indices = @transform_5, window_bounds = array<i64: 128, 256>}]} {
    %c0 = arith.constant 0 : index
    %c0_0 = arith.constant 0 : index
    %0 = vector.load %arg1[%c0, %c0_0] : memref<128x256xf32, #tpu.memory_space<vmem>>, vector<128x256xf32>
    %1 = arith.truncf %0 : vector<128x256xf32> to vector<128x256xbf16>
    %c0_1 = arith.constant 0 : index
    %c0_2 = arith.constant 0 : index
    %2 = vector.load %arg2[%c0_1, %c0_2] : memref<256x256xbf16, #tpu.memory_space<vmem>>, vector<256x256xbf16>
    %cst = arith.constant dense<0.000000e+00> : vector<128x256xf32>
    %3 = tpu.matmul %1, %2, %cst {dimension_numbers = #tpu.dot_dimension_numbers<[1], [0], [0], [1], [0, 0, 1, 1], [], []>} : vector<128x256xbf16>, vector<256x256xbf16>, vector<128x256xf32> -> vector<128x256xf32>
    %c0_3 = arith.constant 0 : index
    %c0_4 = arith.constant 0 : index
    %4 = vector.load %arg3[%c0_3, %c0_4] : memref<1x256xf32, #tpu.memory_space<vmem>>, vector<1x256xf32>
    %5 = vector.broadcast %4 : vector<1x256xf32> to vector<128x256xf32>
    %6 = arith.addf %3, %5 : vector<128x256xf32>
    %cst_5 = arith.constant 0.000000e+00 : f32
    %7 = vector.broadcast %cst_5 : f32 to vector<128x256xf32>
    %8 = arith.maximumf %6, %7 : vector<128x256xf32>
    %9 = arith.truncf %8 : vector<128x256xf32> to vector<128x256xbf16>
    %c0_6 = arith.constant 0 : index
    %c0_7 = arith.constant 0 : index
    %10 = vector.load %arg4[%c0_6, %c0_7] : memref<256x256xbf16, #tpu.memory_space<vmem>>, vector<256x256xbf16>
    %cst_8 = arith.constant dense<0.000000e+00> : vector<128x256xf32>
    %11 = tpu.matmul %9, %10, %cst_8 {dimension_numbers = #tpu.dot_dimension_numbers<[1], [0], [0], [1], [0, 0, 1, 1], [], []>} : vector<128x256xbf16>, vector<256x256xbf16>, vector<128x256xf32> -> vector<128x256xf32>
    %c0_9 = arith.constant 0 : index
    %c0_10 = arith.constant 0 : index
    %12 = vector.load %arg5[%c0_9, %c0_10] : memref<1x256xf32, #tpu.memory_space<vmem>>, vector<1x256xf32>
    %13 = vector.broadcast %12 : vector<1x256xf32> to vector<128x256xf32>
    %14 = arith.addf %11, %13 : vector<128x256xf32>
    %cst_11 = arith.constant 0.000000e+00 : f32
    %15 = vector.broadcast %cst_11 : f32 to vector<128x256xf32>
    %16 = arith.maximumf %14, %15 : vector<128x256xf32>
    %c0_12 = arith.constant 0 : index
    %c0_13 = arith.constant 0 : index
    %17 = vector.load %arg1[%c0_12, %c0_13] : memref<128x256xf32, #tpu.memory_space<vmem>>, vector<128x256xf32>
    %18 = arith.addf %17, %16 : vector<128x256xf32>
    %c0_14 = arith.constant 0 : index
    %c0_15 = arith.constant 0 : index
    %19 = vector.load %arg6[%c0_14, %c0_15] : memref<128x256xf32, #tpu.memory_space<vmem>>, vector<128x256xf32>
    tpu.vector_store %arg6[%c0_14, %c0_15], %18 {strides = array<i32>} : memref<128x256xf32, #tpu.memory_space<vmem>>, vector<128x256xf32>,
    return
  }
  func.func @transform_0(%arg0: i32) -> (i32, i32) {
    %c0_i32 = arith.constant 0 : i32
    %c0_i32_0 = arith.constant 0 : i32
    return %arg0, %c0_i32 : i32, i32
  }
  func.func @transform_1(%arg0: i32) -> (i32, i32) {
    %c0_i32 = arith.constant 0 : i32
    %c0_i32_0 = arith.constant 0 : i32
    %c0_i32_1 = arith.constant 0 : i32
    return %c0_i32, %c0_i32_0 : i32, i32
  }
  func.func @transform_2(%arg0: i32) -> (i32, i32) {
    %c0_i32 = arith.constant 0 : i32
    %c0_i32_0 = arith.constant 0 : i32
    %c0_i32_1 = arith.constant 0 : i32
    return %c0_i32, %c0_i32_0 : i32, i32
  }
  func.func @transform_3(%arg0: i32) -> (i32, i32) {
    %c0_i32 = arith.constant 0 : i32
    %c0_i32_0 = arith.constant 0 : i32
    %c0_i32_1 = arith.constant 0 : i32
    return %c0_i32, %c0_i32_0 : i32, i32
  }
  func.func @transform_4(%arg0: i32) -> (i32, i32) {
    %c0_i32 = arith.constant 0 : i32
    %c0_i32_0 = arith.constant 0 : i32
    %c0_i32_1 = arith.constant 0 : i32
    return %c0_i32, %c0_i32_0 : i32, i32
  }
  func.func @transform_5(%arg0: i32) -> (i32, i32) {
    %c0_i32 = arith.constant 0 : i32
    %c0_i32_0 = arith.constant 0 : i32
    return %arg0, %c0_i32 : i32, i32
  }
}

</mosaic_0001>

<llo_original>
// kernel: tpu_custom_call.1
$region0: #{tpu_custom_call.1}
  #allocation0 [shape = 'u32[]', space=smem, size = 0x4, offset = 0x4, fixed_abs, tag = 'smem constant byte address 0x4 - core index']
  #allocation1 [shape = 'u32[144,128]{1,0:T(1,128)}', space=vmem, size = 0x12000, scoped, tag = 'internal scratch']
  %s0 = inlined_call_operand.hbm [shape: f32[300,256], index: 0, kind: input, shape index: {}]
  %s1 = inlined_call_operand.hbm [shape: bf16[256,256], index: 1, kind: input, shape index: {}]
  %s2 = inlined_call_operand.vmem [shape: f32[1,256], index: 2, kind: input, shape index: {}]
  %s3 = inlined_call_operand.hbm [shape: bf16[256,256], index: 3, kind: input, shape index: {}]
  %s4 = inlined_call_operand.vmem [shape: f32[1,256], index: 4, kind: input, shape index: {}]
  %s5 = inlined_call_operand.hbm [shape: f32[300,256], index: 5, kind: output, shape index: {}]
  %s6 = sld [smem:[#allocation0]]
  $region65: #{tpu_custom_call.1} parent=0
    _
  %s8 = ssub.s32 1, %s6
  %s9 = scalar_select 0, %s8, %s6
  $region1: #{tpu_custom_call.1} parent=0
    #allocation2 [shape = 'u8[262144]{0}', space=vmem, size = 0x40000, scoped, tag = 'input window, operand 0']
    #allocation3 [shape = 's32[2]{0}', space=sflag, size = 0x8, scoped, tag = 'scoped memory for tpu_custom_call.1']
    #allocation4 [shape = 's32[2]{0}', space=sflag, size = 0x8, scoped, tag = 'scoped memory for tpu_custom_call.1']
    #allocation5 [shape = 'u8[131072]{0}', space=vmem, size = 0x20000, scoped, tag = 'input window, operand 1, single buffered']
    #allocation6 [shape = 's32[1]{0}', space=sflag, size = 0x4, scoped, tag = 'scoped memory for tpu_custom_call.1']
    #allocation7 [shape = 'u8[131072]{0}', space=vmem, size = 0x20000, scoped, tag = 'input window, operand 3, single buffered']
    #allocation8 [shape = 'u8[262144]{0}', space=vmem, size = 0x40000, scoped, tag = 'output window, operand 0']
    %10 = vsyncpa [#allocation3], 0
    %s11 = scalar_lea.sflag [#allocation3], 1
    %12 = vsyncpa %s11, 0
    %13 = vsyncpa [#allocation6], 0
    %14 = vsyncpa [#allocation4], 0
    %s15 = scalar_lea.sflag [#allocation4], 1
    %16 = vsyncpa %s15, 0
    loop: start=0, step=1, limit=5
    $region2: #{tpu_custom_call.1} parent=1 // loop_pre_header
      _
    $region3: #{tpu_custom_call.1} parent=1 // loop_header
      %s18 = sphi 0, %s22
      %p19 = scmp.ge.s32.totalorder %s18, 5
      %s28 = sphi 0, %s30
      %s31 = sphi 0, %s28
      %s32 = sphi 0, %s31
      %s48 = sphi 0, %s32
      %s52 = sphi 0, %s52
      %s54 = sphi 0, %s52
      %s55 = sphi 0, %s54
      %s69 = sphi 0, %s55
      %s73 = sphi 0, %s73
      %s75 = sphi 0, %s73
      %s76 = sphi 0, %s75
      %s90 = sphi 0, %s76
      %s94 = sphi 0, %s94
      %s96 = sphi 0, %s94
      %s97 = sphi 0, %s96
      %s111 = sphi 0, %s97
      %s115 = sphi 0, %s115
      %s117 = sphi 0, %s115
      %s118 = sphi 0, %s117
      %s132 = sphi 0, %s118
      %s138 = sphi 0, %s140
      %s141 = sphi 0, %s138
      %s142 = sphi 0, %s141
      %s158 = sphi 0, %s142
    $region4: #{tpu_custom_call.1} parent=1 // loop_header_branch
      %21 = sbr.rel (%p19) target = $region8
    $region5: #{tpu_custom_call.1} parent=1 // loop_body
      %s23 = ssub.s32 %s18, 1
      %s24 = ssub.s32 %s18, 2
      %s25 = sadd.s32 %s18, 1
      %s26 = ssub.s32 %s18, %s25
      %p27 = scmp.eq.s32.totalorder %s26, 0
      %s29 = sadd.s32 %s28, 1
      %s30 = scalar_select %p27, %s28, %s29
      %p33 = pneg %p27
      %p34 = scmp.eq.s32.totalorder %s18, 2
      %p35 = por %p33, %p34
      %p36 = scmp.ne.s32.totalorder %s28, %s31
      %p37 = scmp.eq.s32.totalorder %s18, 0
      %p38 = por %p36, %p37
      %p39 = scmp.ne.s32.totalorder %s28, %s31
      %p40 = scmp.eq.s32.totalorder %s23, 2
      %p41 = por %p39, %p40
      %p42 = scmp.ne.s32.totalorder %s31, %s32
      %p43 = scmp.eq.s32.totalorder %s23, 0
      %p44 = por %p42, %p43
      %p45 = scmp.ne.s32.totalorder %s31, %s32
      %p46 = scmp.eq.s32.totalorder %s24, 2
      %p47 = por %p45, %p46
      %p49 = scmp.ne.s32.totalorder %s32, %s48
      %p50 = scmp.eq.s32.totalorder %s24, 0
      %p51 = por %p49, %p50
      %s53 = sadd.s32 %s52, 1
      %p56 = scmp.eq.s32.totalorder %s18, 2
      %p57 = scmp.ne.s32.totalorder %s52, %s54
      %p58 = scmp.eq.s32.totalorder %s18, 0
      %p59 = por %p57, %p58
      %p60 = scmp.ne.s32.totalorder %s52, %s54
      %p61 = scmp.eq.s32.totalorder %s23, 2
      %p62 = por %p60, %p61
      %p63 = scmp.ne.s32.totalorder %s54, %s55
      %p64 = scmp.eq.s32.totalorder %s23, 0
      %p65 = por %p63, %p64
      %p66 = scmp.ne.s32.totalorder %s54, %s55
      %p67 = scmp.eq.s32.totalorder %s24, 2
      %p68 = por %p66, %p67
      %p70 = scmp.ne.s32.totalorder %s55, %s69
      %p71 = scmp.eq.s32.totalorder %s24, 0
      %p72 = por %p70, %p71
      %s74 = sadd.s32 %s73, 1
      %p77 = scmp.eq.s32.totalorder %s18, 2
      %p78 = scmp.ne.s32.totalorder %s73, %s75
      %p79 = scmp.eq.s32.totalorder %s18, 0
      %p80 = por %p78, %p79
      %p81 = scmp.ne.s32.totalorder %s73, %s75
      %p82 = scmp.eq.s32.totalorder %s23, 2
      %p83 = por %p81, %p82
      %p84 = scmp.ne.s32.totalorder %s75, %s76
      %p85 = scmp.eq.s32.totalorder %s23, 0
      %p86 = por %p84, %p85
      %p87 = scmp.ne.s32.totalorder %s75, %s76
      %p88 = scmp.eq.s32.totalorder %s24, 2
      %p89 = por %p87, %p88
      %p91 = scmp.ne.s32.totalorder %s76, %s90
      %p92 = scmp.eq.s32.totalorder %s24, 0
      %p93 = por %p91, %p92
      %s95 = sadd.s32 %s94, 1
      %p98 = scmp.eq.s32.totalorder %s18, 2
      %p99 = scmp.ne.s32.totalorder %s94, %s96
      %p100 = scmp.eq.s32.totalorder %s18, 0
      %p101 = por %p99, %p100
      %p102 = scmp.ne.s32.totalorder %s94, %s96
      %p103 = scmp.eq.s32.totalorder %s23, 2
      %p104 = por %p102, %p103
      %p105 = scmp.ne.s32.totalorder %s96, %s97
      %p106 = scmp.eq.s32.totalorder %s23, 0
      %p107 = por %p105, %p106
      %p108 = scmp.ne.s32.totalorder %s96, %s97
      %p109 = scmp.eq.s32.totalorder %s24, 2
      %p110 = por %p108, %p109
      %p112 = scmp.ne.s32.totalorder %s97, %s111
      %p113 = scmp.eq.s32.totalorder %s24, 0
      %p114 = por %p112, %p113
      %s116 = sadd.s32 %s115, 1
      %p119 = scmp.eq.s32.totalorder %s18, 2
      %p120 = scmp.ne.s32.totalorder %s115, %s117
      %p121 = scmp.eq.s32.totalorder %s18, 0
      %p122 = por %p120, %p121
      %p123 = scmp.ne.s32.totalorder %s115, %s117
      %p124 = scmp.eq.s32.totalorder %s23, 2
      %p125 = por %p123, %p124
      %p126 = scmp.ne.s32.totalorder %s117, %s118
      %p127 = scmp.eq.s32.totalorder %s23, 0
      %p128 = por %p126, %p127
      %p129 = scmp.ne.s32.totalorder %s117, %s118
      %p130 = scmp.eq.s32.totalorder %s24, 2
      %p131 = por %p129, %p130
      %p133 = scmp.ne.s32.totalorder %s118, %s132
      %p134 = scmp.eq.s32.totalorder %s24, 0
      %p135 = por %p133, %p134
      %s136 = ssub.s32 %s18, %s25
      %p137 = scmp.eq.s32.totalorder %s136, 0
      %s139 = sadd.s32 %s138, 1
      %s140 = scalar_select %p137, %s138, %s139
      %p143 = pneg %p137
      %p144 = scmp.eq.s32.totalorder %s18, 2
      %p145 = por %p143, %p144
      %p146 = scmp.ne.s32.totalorder %s138, %s141
      %p147 = scmp.eq.s32.totalorder %s18, 0
      %p148 = por %p146, %p147
      %p149 = scmp.ne.s32.totalorder %s138, %s141
      %p150 = scmp.eq.s32.totalorder %s23, 2
      %p151 = por %p149, %p150
      %p152 = scmp.ne.s32.totalorder %s141, %s142
      %p153 = scmp.eq.s32.totalorder %s23, 0
      %p154 = por %p152, %p153
      %p155 = scmp.ne.s32.totalorder %s141, %s142
      %p156 = scmp.eq.s32.totalorder %s24, 2
      %p157 = por %p155, %p156
      %p159 = scmp.ne.s32.totalorder %s142, %s158
      %p160 = scmp.eq.s32.totalorder %s24, 0
      %p161 = por %p159, %p160
      %p162 = scmp.le.s32.totalorder 1, %s18
      %p163 = scmp.lt.s32.totalorder %s18, 4
      %p164 = pnand %p162, %p163
      %p165 = pneg %p164
      // Predicated region
      $region9: #{tpu_custom_call.1} parent=5 // pred_check
        _
      $region10: #{tpu_custom_call.1} parent=5 // pred_check_branch
        %167 = sbr.rel (%p164) target = $region12
      $region11: #{tpu_custom_call.1} parent=5 // pred_region
        %s168 = ssub.s32 %s18, 1
        // Predicated region
        $region13: #{tpu_custom_call.1} parent=11 // pred_check
          %p169 = pneg %p65
        $region14: #{tpu_custom_call.1} parent=11 // pred_check_branch
          %171 = sbr.rel (%p169) target = $region16
        $region15: #{tpu_custom_call.1} parent=11 // pred_region
          %s173 = ssub.s32 4096, 4096
          %174 = vsyncadd [#allocation6], %s173
          %s175 = sshll.u32 [#allocation5], 4
          %s176 = int_to_ptr.vmem [resolvable:$true] %s175
          %181 = dma.hbm_to_vmem [thread:$0]  %s1, 4096, %s176, [#allocation6], 128, 128, 8
        $region16: #{tpu_custom_call.1} parent=11 // pred_fallthru
          _
        // Predicated region
        $region17: #{tpu_custom_call.1} parent=11 // pred_check
          %p182 = pneg %p86
        $region18: #{tpu_custom_call.1} parent=11 // pred_check_branch
          %184 = sbr.rel (%p182) target = $region20
        $region19: #{tpu_custom_call.1} parent=11 // pred_region
          _
        $region20: #{tpu_custom_call.1} parent=11 // pred_fallthru
          _
        // Predicated region
        $region21: #{tpu_custom_call.1} parent=11 // pred_check
          %p185 = pneg %p107
        $region22: #{tpu_custom_call.1} parent=11 // pred_check_branch
          %187 = sbr.rel (%p185) target = $region24
        $region23: #{tpu_custom_call.1} parent=11 // pred_region
          %s189 = ssub.s32 4096, 4096
          %190 = vsyncadd [#allocation6], %s189
          %s191 = sshll.u32 [#allocation7], 4
          %s192 = int_to_ptr.vmem [resolvable:$true] %s191
          %197 = dma.hbm_to_vmem [thread:$0]  %s3, 4096, %s192, [#allocation6], 128, 128, 8
        $region24: #{tpu_custom_call.1} parent=11 // pred_fallthru
          _
        // Predicated region
        $region25: #{tpu_custom_call.1} parent=11 // pred_check
          %p198 = pneg %p128
        $region26: #{tpu_custom_call.1} parent=11 // pred_check_branch
          %200 = sbr.rel (%p198) target = $region28
        $region27: #{tpu_custom_call.1} parent=11 // pred_region
          _
        $region28: #{tpu_custom_call.1} parent=11 // pred_fallthru
          _
      $region12: #{tpu_custom_call.1} parent=5 // pred_fallthru
        _
      %p201 = scmp.lt.s32.totalorder %s18, 3
      // Predicated region
      $region29: #{tpu_custom_call.1} parent=5 // pred_check
        %p202 = pneg %p201
      $region30: #{tpu_custom_call.1} parent=5 // pred_check_branch
        %204 = sbr.rel (%p202) target = $region32
      $region31: #{tpu_custom_call.1} parent=5 // pred_region
        // Predicated region
        $region33: #{tpu_custom_call.1} parent=31 // pred_check
          %p205 = pneg %p38
        $region34: #{tpu_custom_call.1} parent=31 // pred_check_branch
          %207 = sbr.rel (%p205) target = $region36
        $region35: #{tpu_custom_call.1} parent=31 // pred_region
          %s208 = sand.u32 %s28, 1
          %s209 = scalar_lea.sflag [#allocation3], %s208
          %s210 = sand.u32 %s28, 1
          %s211 = smul.addr %s210, 256
          %s212 = scalar_lea.vmem [#allocation2], %s211
          %s213 = smul.u32 16, %s18
          %s214 = ssub.s32 38, %s213
          %p215 = scmp.lt.s32.totalorder %s214, 16
          %s216 = scalar_select %p215, %s214, 16
          %s217 = smul.u32 128, %s216
          %s218 = smul.u32 %s217, 2
          %s220 = ssub.s32 4096, %s218
          %221 = vsyncadd %s209, %s220
          %p222 = scmp.ne.s32.totalorder 0, %s218
          %s223 = smul.addr %s213, 2
          %s224 = smul.addr %s223, 128
          %s225 = scalar_lea.hbm %s0, %s224
          %s226 = smul.u32 16, %s216
          %s227 = sshll.u32 %s212, 4
          %s228 = int_to_ptr.vmem [resolvable:$true] %s227
          %s229 = sshll.u32 %s226, 4
          %233 = dma.hbm_to_vmem [thread:$0]  (%p222), %s225, %s229, %s228, %s209, 256, 256, 16
        $region36: #{tpu_custom_call.1} parent=31 // pred_fallthru
          _
      $region32: #{tpu_custom_call.1} parent=5 // pred_fallthru
        _
      %p234 = scmp.le.s32.totalorder 1, %s18
      %p235 = scmp.lt.s32.totalorder %s18, 4
      %p236 = pnand %p234, %p235
      %p237 = pneg %p236
      // Predicated region
      $region37: #{tpu_custom_call.1} parent=5 // pred_check
        _
      $region38: #{tpu_custom_call.1} parent=5 // pred_check_branch
        %239 = sbr.rel (%p236) target = $region40
      $region39: #{tpu_custom_call.1} parent=5 // pred_region
        %s240 = ssub.s32 %s18, 1
        %s241 = sand.u32 %s31, 1
        %s242 = scalar_lea.sflag [#allocation3], %s241
        %s243 = sand.u32 %s31, 1
        %s244 = smul.addr %s243, 256
        %s245 = scalar_lea.vmem [#allocation2], %s244
        // Predicated region
        $region41: #{tpu_custom_call.1} parent=39 // pred_check
          %p246 = pneg %p44
        $region42: #{tpu_custom_call.1} parent=39 // pred_check_branch
          %248 = sbr.rel (%p246) target = $region44
        $region43: #{tpu_custom_call.1} parent=39 // pred_region
          %249 = dma.done %s242, 4096
        $region44: #{tpu_custom_call.1} parent=39 // pred_fallthru
          _
        // Predicated region
        $region45: #{tpu_custom_call.1} parent=39 // pred_check
          %p250 = pneg %p65
        $region46: #{tpu_custom_call.1} parent=39 // pred_check_branch
          %252 = sbr.rel (%p250) target = $region48
        $region47: #{tpu_custom_call.1} parent=39 // pred_region
          %253 = dma.done [#allocation6], 4096
        $region48: #{tpu_custom_call.1} parent=39 // pred_fallthru
          _
        // Predicated region
        $region49: #{tpu_custom_call.1} parent=39 // pred_check
          %p254 = pneg %p107
        $region50: #{tpu_custom_call.1} parent=39 // pred_check_branch
          %256 = sbr.rel (%p254) target = $region52
        $region51: #{tpu_custom_call.1} parent=39 // pred_region
          %257 = dma.done [#allocation6], 4096
        $region52: #{tpu_custom_call.1} parent=39 // pred_fallthru
          _
        %s258 = sand.u32 %s31, 1
        %s259 = scalar_lea.sflag [#allocation3], %s258
        %s260 = sand.u32 %s31, 1
        %s261 = smul.addr %s260, 256
        %s262 = scalar_lea.vmem [#allocation2], %s261
        %p263 = pneg %p44
        %p264 = pneg %p41
        %p265 = pneg %p65
        %p266 = pneg %p62
        %p267 = pneg %p86
        %p268 = pneg %p83
        %p269 = pneg %p107
        %p270 = pneg %p104
        %p271 = pneg %p128
        %p272 = pneg %p125
        %p273 = pneg %p154
        %p274 = pneg %p151
        %s275 = sand.u32 %s141, 1
        %s276 = scalar_lea.sflag [#allocation4], %s275
        %s277 = sand.u32 %s141, 1
        %s278 = smul.addr %s277, 256
        %s279 = scalar_lea.vmem [#allocation8], %s278
        %s280 = smul.u32 16, %s23
        %s281 = ssub.s32 38, %s280
        %p282 = scmp.lt.s32.totalorder %s281, 16
        %s283 = scalar_select %p282, %s281, 16
        %s284 = smul.u32 128, %s283
        %s285 = smul.u32 %s284, 2
        %s286 = smul.u32 16, %s23
        %s287 = ssub.s32 38, %s286
        %p288 = scmp.lt.s32.totalorder %s287, 16
        %s289 = scalar_select %p288, %s287, 16
        %s290 = smul.u32 128, %s289
        %s291 = smul.u32 %s290, 2
        %v292 = vld [vmem:[%s245] sm:$0xff]
        %v293 = vld [vmem:[%s245 + $0x8] sm:$0xff]
        %v294 = vld [vmem:[%s245 + $0x10] sm:$0xff]
        %v295 = vld [vmem:[%s245 + $0x18] sm:$0xff]
        %v296 = vld [vmem:[%s245 + $0x20] sm:$0xff]
        %v297 = vld [vmem:[%s245 + $0x28] sm:$0xff]
        %v298 = vld [vmem:[%s245 + $0x30] sm:$0xff]
        %v299 = vld [vmem:[%s245 + $0x38] sm:$0xff]
        %v300 = vld [vmem:[%s245 + $0x40] sm:$0xff]
        %v301 = vld [vmem:[%s245 + $0x48] sm:$0xff]
        %v302 = vld [vmem:[%s245 + $0x50] sm:$0xff]
        %v303 = vld [vmem:[%s245 + $0x58] sm:$0xff]
        %v304 = vld [vmem:[%s245 + $0x60] sm:$0xff]
        %v305 = vld [vmem:[%s245 + $0x68] sm:$0xff]
        %v306 = vld [vmem:[%s245 + $0x70] sm:$0xff]
        %v307 = vld [vmem:[%s245 + $0x78] sm:$0xff]
        %v308 = vld [vmem:[%s245 + $0x80] sm:$0xff]
        %v309 = vld [vmem:[%s245 + $0x88] sm:$0xff]
        %v310 = vld [vmem:[%s245 + $0x90] sm:$0xff]
        %v311 = vld [vmem:[%s245 + $0x98] sm:$0xff]
        %v312 = vld [vmem:[%s245 + $0xa0] sm:$0xff]
        %v313 = vld [vmem:[%s245 + $0xa8] sm:$0xff]
        %v314 = vld [vmem:[%s245 + $0xb0] sm:$0xff]
        %v315 = vld [vmem:[%s245 + $0xb8] sm:$0xff]
        %v316 = vld [vmem:[%s245 + $0xc0] sm:$0xff]
        %v317 = vld [vmem:[%s245 + $0xc8] sm:$0xff]
        %v318 = vld [vmem:[%s245 + $0xd0] sm:$0xff]
        %v319 = vld [vmem:[%s245 + $0xd8] sm:$0xff]
        %v320 = vld [vmem:[%s245 + $0xe0] sm:$0xff]
        %v321 = vld [vmem:[%s245 + $0xe8] sm:$0xff]
        %v322 = vld [vmem:[%s245 + $0xf0] sm:$0xff]
        %v323 = vld [vmem:[%s245 + $0xf8] sm:$0xff]
        %v324 = vpack.c.bf16 %v294, %v292
        %v325 = vpack.c.bf16 %v295, %v293
        %v326 = vpack.c.bf16 %v298, %v296
        %v327 = vpack.c.bf16 %v299, %v297
        %v328 = vpack.c.bf16 %v302, %v300
        %v329 = vpack.c.bf16 %v303, %v301
        %v330 = vpack.c.bf16 %v306, %v304
        %v331 = vpack.c.bf16 %v307, %v305
        %v332 = vpack.c.bf16 %v310, %v308
        %v333 = vpack.c.bf16 %v311, %v309
        %v334 = vpack.c.bf16 %v314, %v312
        %v335 = vpack.c.bf16 %v315, %v313
        %v336 = vpack.c.bf16 %v318, %v316
        %v337 = vpack.c.bf16 %v319, %v317
        %v338 = vpack.c.bf16 %v322, %v320
        %v339 = vpack.c.bf16 %v323, %v321
        %v340 = vld [vmem:[#allocation5] sm:$0xff]
        %v341 = vld [vmem:[#allocation5 + $0x8] sm:$0xff]
        %v342 = vld [vmem:[#allocation5 + $0x10] sm:$0xff]
        %v343 = vld [vmem:[#allocation5 + $0x18] sm:$0xff]
        %v344 = vld [vmem:[#allocation5 + $0x20] sm:$0xff]
        %v345 = vld [vmem:[#allocation5 + $0x28] sm:$0xff]
        %v346 = vld [vmem:[#allocation5 + $0x30] sm:$0xff]
        %v347 = vld [vmem:[#allocation5 + $0x38] sm:$0xff]
        %v348 = vld [vmem:[#allocation5 + $0x40] sm:$0xff]
        %v349 = vld [vmem:[#allocation5 + $0x48] sm:$0xff]
        %v350 = vld [vmem:[#allocation5 + $0x50] sm:$0xff]
        %v351 = vld [vmem:[#allocation5 + $0x58] sm:$0xff]
        %v352 = vld [vmem:[#allocation5 + $0x60] sm:$0xff]
        %v353 = vld [vmem:[#allocation5 + $0x68] sm:$0xff]
        %v354 = vld [vmem:[#allocation5 + $0x70] sm:$0xff]
        %v355 = vld [vmem:[#allocation5 + $0x78] sm:$0xff]
        %v356 = vld [vmem:[#allocation5 + $0x80] sm:$0xff]
        %v357 = vld [vmem:[#allocation5 + $0x88] sm:$0xff]
        %v358 = vld [vmem:[#allocation5 + $0x90] sm:$0xff]
        %v359 = vld [vmem:[#allocation5 + $0x98] sm:$0xff]
        %v360 = vld [vmem:[#allocation5 + $0xa0] sm:$0xff]
        %v361 = vld [vmem:[#allocation5 + $0xa8] sm:$0xff]
        %v362 = vld [vmem:[#allocation5 + $0xb0] sm:$0xff]
        %v363 = vld [vmem:[#allocation5 + $0xb8] sm:$0xff]
        %v364 = vld [vmem:[#allocation5 + $0xc0] sm:$0xff]
        %v365 = vld [vmem:[#allocation5 + $0xc8] sm:$0xff]
        %v366 = vld [vmem:[#allocation5 + $0xd0] sm:$0xff]
        %v367 = vld [vmem:[#allocation5 + $0xd8] sm:$0xff]
        %v368 = vld [vmem:[#allocation5 + $0xe0] sm:$0xff]
        %v369 = vld [vmem:[#allocation5 + $0xe8] sm:$0xff]
        %v370 = vld [vmem:[#allocation5 + $0xf0] sm:$0xff]
        %v371 = vld [vmem:[#allocation5 + $0xf8] sm:$0xff]
        %v372 = vld [vmem:[%s2] sm:$0x3]
        %v374 = vlaneseq
        %v375 = vshrl.u32 %v374, 7
        %v376 = vsub.s32 0, %v375
        %v377 = vrot.slane %v372, %v376
        %v378 = vlaneseq
        %v379 = vshrl.u32 %v378, 7
        %v380 = vsub.s32 1, %v379
        %v381 = vrot.slane %v372, %v380
        %v416 = vunpack.c.l.b16 %v340
        %v417 = vunpack.c.h.b16 %v340
        %v418 = vunpack.c.l.b16 %v341
        %v419 = vunpack.c.h.b16 %v341
        %v420 = vunpack.c.l.b16 %v342
        %v421 = vunpack.c.h.b16 %v342
        %v422 = vunpack.c.l.b16 %v343
        %v423 = vunpack.c.h.b16 %v343
        %v424 = vunpack.c.l.b16 %v344
        %v425 = vunpack.c.h.b16 %v344
        %v426 = vunpack.c.l.b16 %v345
        %v427 = vunpack.c.h.b16 %v345
        %v428 = vunpack.c.l.b16 %v346
        %v429 = vunpack.c.h.b16 %v346
        %v430 = vunpack.c.l.b16 %v347
        %v431 = vunpack.c.h.b16 %v347
        %v432 = vunpack.c.l.b16 %v348
        %v433 = vunpack.c.h.b16 %v348
        %v434 = vunpack.c.l.b16 %v349
        %v435 = vunpack.c.h.b16 %v349
        %v436 = vunpack.c.l.b16 %v350
        %v437 = vunpack.c.h.b16 %v350
        %v438 = vunpack.c.l.b16 %v351
        %v439 = vunpack.c.h.b16 %v351
        %v440 = vunpack.c.l.b16 %v352
        %v441 = vunpack.c.h.b16 %v352
        %v442 = vunpack.c.l.b16 %v353
        %v443 = vunpack.c.h.b16 %v353
        %v444 = vunpack.c.l.b16 %v354
        %v445 = vunpack.c.h.b16 %v354
        %v446 = vunpack.c.l.b16 %v355
        %v447 = vunpack.c.h.b16 %v355
        %v448 = vunpack.c.l.b16 %v356
        %v449 = vunpack.c.h.b16 %v356
        %v450 = vunpack.c.l.b16 %v357
        %v451 = vunpack.c.h.b16 %v357
        %v452 = vunpack.c.l.b16 %v358
        %v453 = vunpack.c.h.b16 %v358
        %v454 = vunpack.c.l.b16 %v359
        %v455 = vunpack.c.h.b16 %v359
        %v456 = vunpack.c.l.b16 %v360
        %v457 = vunpack.c.h.b16 %v360
        %v458 = vunpack.c.l.b16 %v361
        %v459 = vunpack.c.h.b16 %v361
        %v460 = vunpack.c.l.b16 %v362
        %v461 = vunpack.c.h.b16 %v362
        %v462 = vunpack.c.l.b16 %v363
        %v463 = vunpack.c.h.b16 %v363
        %v464 = vunpack.c.l.b16 %v364
        %v465 = vunpack.c.h.b16 %v364
        %v466 = vunpack.c.l.b16 %v365
        %v467 = vunpack.c.h.b16 %v365
        %v468 = vunpack.c.l.b16 %v366
        %v469 = vunpack.c.h.b16 %v366
        %v470 = vunpack.c.l.b16 %v367
        %v471 = vunpack.c.h.b16 %v367
        %v472 = vunpack.c.l.b16 %v368
        %v473 = vunpack.c.h.b16 %v368
        %v474 = vunpack.c.l.b16 %v369
        %v475 = vunpack.c.h.b16 %v369
        %v476 = vunpack.c.l.b16 %v370
        %v477 = vunpack.c.h.b16 %v370
        %v478 = vunpack.c.l.b16 %v371
        %v479 = vunpack.c.h.b16 %v371
        %v480 = vpack.c.b16 %v418, %v416
        %v481 = vpack.c.b16 %v419, %v417
        %v482 = vpack.c.b16 %v422, %v420
        %v483 = vpack.c.b16 %v423, %v421
        %v484 = vpack.c.b16 %v426, %v424
        %v485 = vpack.c.b16 %v427, %v425
        %v486 = vpack.c.b16 %v430, %v428
        %v487 = vpack.c.b16 %v431, %v429
        %v488 = vpack.c.b16 %v434, %v432
        %v489 = vpack.c.b16 %v435, %v433
        %v490 = vpack.c.b16 %v438, %v436
        %v491 = vpack.c.b16 %v439, %v437
        %v492 = vpack.c.b16 %v442, %v440
        %v493 = vpack.c.b16 %v443, %v441
        %v494 = vpack.c.b16 %v446, %v444
        %v495 = vpack.c.b16 %v447, %v445
        %v496 = vpack.c.b16 %v450, %v448
        %v497 = vpack.c.b16 %v451, %v449
        %v498 = vpack.c.b16 %v454, %v452
        %v499 = vpack.c.b16 %v455, %v453
        %v500 = vpack.c.b16 %v458, %v456
        %v501 = vpack.c.b16 %v459, %v457
        %v502 = vpack.c.b16 %v462, %v460
        %v503 = vpack.c.b16 %v463, %v461
        %v504 = vpack.c.b16 %v466, %v464
        %v505 = vpack.c.b16 %v467, %v465
        %v506 = vpack.c.b16 %v470, %v468
        %v507 = vpack.c.b16 %v471, %v469
        %v508 = vpack.c.b16 %v474, %v472
        %v509 = vpack.c.b16 %v475, %v473
        %v510 = vpack.c.b16 %v478, %v476
        %v511 = vpack.c.b16 %v479, %v477
        %544 = vmatprep.subr.bf16.mxu0 %v481
        %545 = vmatpush1.bf16.msra.mxu0 %v480
        %546 = vmatprep.subr.bf16.mxu0 %v483
        %547 = vmatpush1.bf16.msra.mxu0 %v482
        %548 = vmatprep.subr.bf16.mxu0 %v485
        %549 = vmatpush1.bf16.msra.mxu0 %v484
        %550 = vmatprep.subr.bf16.mxu0 %v487
        %551 = vmatpush1.bf16.msra.mxu0 %v486
        %552 = vmatprep.subr.bf16.mxu0 %v489
        %553 = vmatpush1.bf16.msra.mxu0 %v488
        %554 = vmatprep.subr.bf16.mxu0 %v491
        %555 = vmatpush1.bf16.msra.mxu0 %v490
        %556 = vmatprep.subr.bf16.mxu0 %v493
        %557 = vmatpush1.bf16.msra.mxu0 %v492
        %558 = vmatprep.subr.bf16.mxu0 %v495
        %559 = vmatpush1.bf16.msra.mxu0 %v494
        %560 = vmatprep.subr.bf16.mxu0 %v497
        %561 = vmatpush1.bf16.msra.mxu0 %v496
        %562 = vmatprep.subr.bf16.mxu0 %v499
        %563 = vmatpush1.bf16.msra.mxu0 %v498
        %564 = vmatprep.subr.bf16.mxu0 %v501
        %565 = vmatpush1.bf16.msra.mxu0 %v500
        %566 = vmatprep.subr.bf16.mxu0 %v503
        %567 = vmatpush1.bf16.msra.mxu0 %v502
        %568 = vmatprep.subr.bf16.mxu0 %v505
        %569 = vmatpush1.bf16.msra.mxu0 %v504
        %570 = vmatprep.subr.bf16.mxu0 %v507
        %571 = vmatpush1.bf16.msra.mxu0 %v506
        %572 = vmatprep.subr.bf16.mxu0 %v509
        %573 = vmatpush1.bf16.msra.mxu0 %v508
        %574 = vmatprep.subr.bf16.mxu0 %v511
        %575 = vmatpush1.bf16.msra.mxu0 %v510
        %576 = vmatprep.mubr.bf16.mxu0 %v325
        %577 = vmatmul.mubr.bf16.gmra.mrb[0].mxu0 %v324
        %v578 = vpop.f32.mrb[0].mxu0
        %v579 = vadd.f32 %v377, %v578
        %v580 = vpop.f32.mrb[0].mxu0
        %v581 = vadd.f32 %v381, %v580
        %v582 = vpop.f32.mrb[0].mxu0
        %v583 = vadd.f32 %v377, %v582
        %v584 = vpop.f32.mrb[0].mxu0
        %v585 = vadd.f32 %v381, %v584
        %586 = vmatprep.mubr.bf16.mxu0 %v327
        %587 = vmatmul.mubr.bf16.gmra.mrb[0].mxu0 %v326
        %v588 = vpop.f32.mrb[0].mxu0
        %v589 = vadd.f32 %v377, %v588
        %v590 = vpop.f32.mrb[0].mxu0
        %v591 = vadd.f32 %v381, %v590
        %v592 = vpop.f32.mrb[0].mxu0
        %v593 = vadd.f32 %v377, %v592
        %v594 = vpop.f32.mrb[0].mxu0
        %v595 = vadd.f32 %v381, %v594
        %596 = vmatprep.mubr.bf16.mxu0 %v329
        %597 = vmatmul.mubr.bf16.gmra.mrb[0].mxu0 %v328
        %v598 = vpop.f32.mrb[0].mxu0
        %v599 = vadd.f32 %v377, %v598
        %v600 = vpop.f32.mrb[0].mxu0
        %v601 = vadd.f32 %v381, %v600
        %v602 = vpop.f32.mrb[0].mxu0
        %v603 = vadd.f32 %v377, %v602
        %v604 = vpop.f32.mrb[0].mxu0
        %v605 = vadd.f32 %v381, %v604
        %606 = vmatprep.mubr.bf16.mxu0 %v331
        %607 = vmatmul.mubr.bf16.gmra.mrb[0].mxu0 %v330
        %v608 = vpop.f32.mrb[0].mxu0
        %v609 = vadd.f32 %v377, %v608
        %v610 = vpop.f32.mrb[0].mxu0
        %v611 = vadd.f32 %v381, %v610
        %v612 = vpop.f32.mrb[0].mxu0
        %v613 = vadd.f32 %v377, %v612
        %v614 = vpop.f32.mrb[0].mxu0
        %v615 = vadd.f32 %v381, %v614
        %616 = vmatprep.mubr.bf16.mxu0 %v333
        %617 = vmatmul.mubr.bf16.gmra.mrb[0].mxu0 %v332
        %v618 = vpop.f32.mrb[0].mxu0
        %v619 = vadd.f32 %v377, %v618
        %v620 = vpop.f32.mrb[0].mxu0
        %v621 = vadd.f32 %v381, %v620
        %v622 = vpop.f32.mrb[0].mxu0
        %v623 = vadd.f32 %v377, %v622
        %v624 = vpop.f32.mrb[0].mxu0
        %v625 = vadd.f32 %v381, %v624
        %626 = vmatprep.mubr.bf16.mxu0 %v335
        %627 = vmatmul.mubr.bf16.gmra.mrb[0].mxu0 %v334
        %v628 = vpop.f32.mrb[0].mxu0
        %v629 = vadd.f32 %v377, %v628
        %v630 = vpop.f32.mrb[0].mxu0
        %v631 = vadd.f32 %v381, %v630
        %v632 = vpop.f32.mrb[0].mxu0
        %v633 = vadd.f32 %v377, %v632
        %v634 = vpop.f32.mrb[0].mxu0
        %v635 = vadd.f32 %v381, %v634
        %636 = vmatprep.mubr.bf16.mxu0 %v337
        %637 = vmatmul.mubr.bf16.gmra.mrb[0].mxu0 %v336
        %v638 = vpop.f32.mrb[0].mxu0
        %v639 = vadd.f32 %v377, %v638
        %v640 = vpop.f32.mrb[0].mxu0
        %v641 = vadd.f32 %v381, %v640
        %v642 = vpop.f32.mrb[0].mxu0
        %v643 = vadd.f32 %v377, %v642
        %v644 = vpop.f32.mrb[0].mxu0
        %v645 = vadd.f32 %v381, %v644
        %646 = vmatprep.mubr.bf16.mxu0 %v339
        %647 = vmatmul.mubr.bf16.gmra.mrb[0].mxu0 %v338
        %v648 = vpop.f32.mrb[0].mxu0
        %v649 = vadd.f32 %v377, %v648
        %v650 = vpop.f32.mrb[0].mxu0
        %v651 = vadd.f32 %v381, %v650
        %v652 = vpop.f32.mrb[0].mxu0
        %v653 = vadd.f32 %v377, %v652
        %v654 = vpop.f32.mrb[0].mxu0
        %v655 = vadd.f32 %v381, %v654
        %656 = vdwg.mxu0
        %v657 = vmax.f32 %v579, 0.0
        %v658 = vmax.f32 %v581, 0.0
        %v659 = vmax.f32 %v583, 0.0
        %v660 = vmax.f32 %v585, 0.0
        %v661 = vmax.f32 %v589, 0.0
        %v662 = vmax.f32 %v591, 0.0
        %v663 = vmax.f32 %v593, 0.0
        %v664 = vmax.f32 %v595, 0.0
        %v665 = vmax.f32 %v599, 0.0
        %v666 = vmax.f32 %v601, 0.0
        %v667 = vmax.f32 %v603, 0.0
        %v668 = vmax.f32 %v605, 0.0
        %v669 = vmax.f32 %v609, 0.0
        %v670 = vmax.f32 %v611, 0.0
        %v671 = vmax.f32 %v613, 0.0
        %v672 = vmax.f32 %v615, 0.0
        %v673 = vmax.f32 %v619, 0.0
        %v674 = vmax.f32 %v621, 0.0
        %v675 = vmax.f32 %v623, 0.0
        %v676 = vmax.f32 %v625, 0.0
        %v677 = vmax.f32 %v629, 0.0
        %v678 = vmax.f32 %v631, 0.0
        %v679 = vmax.f32 %v633, 0.0
        %v680 = vmax.f32 %v635, 0.0
        %v681 = vmax.f32 %v639, 0.0
        %v682 = vmax.f32 %v641, 0.0
        %v683 = vmax.f32 %v643, 0.0
        %v684 = vmax.f32 %v645, 0.0
        %v685 = vmax.f32 %v649, 0.0
        %v686 = vmax.f32 %v651, 0.0
        %v687 = vmax.f32 %v653, 0.0
        %v688 = vmax.f32 %v655, 0.0
        %v689 = vpack.c.bf16 %v659, %v657
        %v690 = vpack.c.bf16 %v660, %v658
        %v691 = vpack.c.bf16 %v663, %v661
        %v692 = vpack.c.bf16 %v664, %v662
        %v693 = vpack.c.bf16 %v667, %v665
        %v694 = vpack.c.bf16 %v668, %v666
        %v695 = vpack.c.bf16 %v671, %v669
        %v696 = vpack.c.bf16 %v672, %v670
        %v697 = vpack.c.bf16 %v675, %v673
        %v698 = vpack.c.bf16 %v676, %v674
        %v699 = vpack.c.bf16 %v679, %v677
        %v700 = vpack.c.bf16 %v680, %v678
        %v701 = vpack.c.bf16 %v683, %v681
        %v702 = vpack.c.bf16 %v684, %v682
        %v703 = vpack.c.bf16 %v687, %v685
        %v704 = vpack.c.bf16 %v688, %v686
        %v705 = vld [vmem:[#allocation7] sm:$0xff]
        %v706 = vld [vmem:[#allocation7 + $0x8] sm:$0xff]
        %v707 = vld [vmem:[#allocation7 + $0x10] sm:$0xff]
        %v708 = vld [vmem:[#allocation7 + $0x18] sm:$0xff]
        %v709 = vld [vmem:[#allocation7 + $0x20] sm:$0xff]
        %v710 = vld [vmem:[#allocation7 + $0x28] sm:$0xff]
        %v711 = vld [vmem:[#allocation7 + $0x30] sm:$0xff]
        %v712 = vld [vmem:[#allocation7 + $0x38] sm:$0xff]
        %v713 = vld [vmem:[#allocation7 + $0x40] sm:$0xff]
        %v714 = vld [vmem:[#allocation7 + $0x48] sm:$0xff]
        %v715 = vld [vmem:[#allocation7 + $0x50] sm:$0xff]
        %v716 = vld [vmem:[#allocation7 + $0x58] sm:$0xff]
        %v717 = vld [vmem:[#allocation7 + $0x60] sm:$0xff]
        %v718 = vld [vmem:[#allocation7 + $0x68] sm:$0xff]
        %v719 = vld [vmem:[#allocation7 + $0x70] sm:$0xff]
        %v720 = vld [vmem:[#allocation7 + $0x78] sm:$0xff]
        %v721 = vld [vmem:[#allocation7 + $0x80] sm:$0xff]
        %v722 = vld [vmem:[#allocation7 + $0x88] sm:$0xff]
        %v723 = vld [vmem:[#allocation7 + $0x90] sm:$0xff]
        %v724 = vld [vmem:[#allocation7 + $0x98] sm:$0xff]
        %v725 = vld [vmem:[#allocation7 + $0xa0] sm:$0xff]
        %v726 = vld [vmem:[#allocation7 + $0xa8] sm:$0xff]
        %v727 = vld [vmem:[#allocation7 + $0xb0] sm:$0xff]
        %v728 = vld [vmem:[#allocation7 + $0xb8] sm:$0xff]
        %v729 = vld [vmem:[#allocation7 + $0xc0] sm:$0xff]
        %v730 = vld [vmem:[#allocation7 + $0xc8] sm:$0xff]
        %v731 = vld [vmem:[#allocation7 + $0xd0] sm:$0xff]
        %v732 = vld [vmem:[#allocation7 + $0xd8] sm:$0xff]
        %v733 = vld [vmem:[#allocation7 + $0xe0] sm:$0xff]
        %v734 = vld [vmem:[#allocation7 + $0xe8] sm:$0xff]
        %v735 = vld [vmem:[#allocation7 + $0xf0] sm:$0xff]
        %v736 = vld [vmem:[#allocation7 + $0xf8] sm:$0xff]
        %v737 = vld [vmem:[%s4] sm:$0x3]
        %v739 = vlaneseq
        %v740 = vshrl.u32 %v739, 7
        %v741 = vsub.s32 0, %v740
        %v742 = vrot.slane %v737, %v741
        %v743 = vlaneseq
        %v744 = vshrl.u32 %v743, 7
        %v745 = vsub.s32 1, %v744
        %v746 = vrot.slane %v737, %v745
        %v781 = vunpack.c.l.b16 %v705
        %v782 = vunpack.c.h.b16 %v705
        %v783 = vunpack.c.l.b16 %v706
        %v784 = vunpack.c.h.b16 %v706
        %v785 = vunpack.c.l.b16 %v707
        %v786 = vunpack.c.h.b16 %v707
        %v787 = vunpack.c.l.b16 %v708
        %v788 = vunpack.c.h.b16 %v708
        %v789 = vunpack.c.l.b16 %v709
        %v790 = vunpack.c.h.b16 %v709
        %v791 = vunpack.c.l.b16 %v710
        %v792 = vunpack.c.h.b16 %v710
        %v793 = vunpack.c.l.b16 %v711
        %v794 = vunpack.c.h.b16 %v711
        %v795 = vunpack.c.l.b16 %v712
        %v796 = vunpack.c.h.b16 %v712
        %v797 = vunpack.c.l.b16 %v713
        %v798 = vunpack.c.h.b16 %v713
        %v799 = vunpack.c.l.b16 %v714
        %v800 = vunpack.c.h.b16 %v714
        %v801 = vunpack.c.l.b16 %v715
        %v802 = vunpack.c.h.b16 %v715
        %v803 = vunpack.c.l.b16 %v716
        %v804 = vunpack.c.h.b16 %v716
        %v805 = vunpack.c.l.b16 %v717
        %v806 = vunpack.c.h.b16 %v717
        %v807 = vunpack.c.l.b16 %v718
        %v808 = vunpack.c.h.b16 %v718
        %v809 = vunpack.c.l.b16 %v719
        %v810 = vunpack.c.h.b16 %v719
        %v811 = vunpack.c.l.b16 %v720
        %v812 = vunpack.c.h.b16 %v720
        %v813 = vunpack.c.l.b16 %v721
        %v814 = vunpack.c.h.b16 %v721
        %v815 = vunpack.c.l.b16 %v722
        %v816 = vunpack.c.h.b16 %v722
        %v817 = vunpack.c.l.b16 %v723
        %v818 = vunpack.c.h.b16 %v723
        %v819 = vunpack.c.l.b16 %v724
        %v820 = vunpack.c.h.b16 %v724
        %v821 = vunpack.c.l.b16 %v725
        %v822 = vunpack.c.h.b16 %v725
        %v823 = vunpack.c.l.b16 %v726
        %v824 = vunpack.c.h.b16 %v726
        %v825 = vunpack.c.l.b16 %v727
        %v826 = vunpack.c.h.b16 %v727
        %v827 = vunpack.c.l.b16 %v728
        %v828 = vunpack.c.h.b16 %v728
        %v829 = vunpack.c.l.b16 %v729
        %v830 = vunpack.c.h.b16 %v729
        %v831 = vunpack.c.l.b16 %v730
        %v832 = vunpack.c.h.b16 %v730
        %v833 = vunpack.c.l.b16 %v731
        %v834 = vunpack.c.h.b16 %v731
        %v835 = vunpack.c.l.b16 %v732
        %v836 = vunpack.c.h.b16 %v732
        %v837 = vunpack.c.l.b16 %v733
        %v838 = vunpack.c.h.b16 %v733
        %v839 = vunpack.c.l.b16 %v734
        %v840 = vunpack.c.h.b16 %v734
        %v841 = vunpack.c.l.b16 %v735
        %v842 = vunpack.c.h.b16 %v735
        %v843 = vunpack.c.l.b16 %v736
        %v844 = vunpack.c.h.b16 %v736
        %v845 = vpack.c.b16 %v783, %v781
        %v846 = vpack.c.b16 %v784, %v782
        %v847 = vpack.c.b16 %v787, %v785
        %v848 = vpack.c.b16 %v788, %v786
        %v849 = vpack.c.b16 %v791, %v789
        %v850 = vpack.c.b16 %v792, %v790
        %v851 = vpack.c.b16 %v795, %v793
        %v852 = vpack.c.b16 %v796, %v794
        %v853 = vpack.c.b16 %v799, %v797
        %v854 = vpack.c.b16 %v800, %v798
        %v855 = vpack.c.b16 %v803, %v801
        %v856 = vpack.c.b16 %v804, %v802
        %v857 = vpack.c.b16 %v807, %v805
        %v858 = vpack.c.b16 %v808, %v806
        %v859 = vpack.c.b16 %v811, %v809
        %v860 = vpack.c.b16 %v812, %v810
        %v861 = vpack.c.b16 %v815, %v813
        %v862 = vpack.c.b16 %v816, %v814
        %v863 = vpack.c.b16 %v819, %v817
        %v864 = vpack.c.b16 %v820, %v818
        %v865 = vpack.c.b16 %v823, %v821
        %v866 = vpack.c.b16 %v824, %v822
        %v867 = vpack.c.b16 %v827, %v825
        %v868 = vpack.c.b16 %v828, %v826
        %v869 = vpack.c.b16 %v831, %v829
        %v870 = vpack.c.b16 %v832, %v830
        %v871 = vpack.c.b16 %v835, %v833
        %v872 = vpack.c.b16 %v836, %v834
        %v873 = vpack.c.b16 %v839, %v837
        %v874 = vpack.c.b16 %v840, %v838
        %v875 = vpack.c.b16 %v843, %v841
        %v876 = vpack.c.b16 %v844, %v842
        %909 = vmatprep.subr.bf16.mxu0 %v846
        %910 = vmatpush1.bf16.msra.mxu0 %v845
        %911 = vmatprep.subr.bf16.mxu0 %v848
        %912 = vmatpush1.bf16.msra.mxu0 %v847
        %913 = vmatprep.subr.bf16.mxu0 %v850
        %914 = vmatpush1.bf16.msra.mxu0 %v849
        %915 = vmatprep.subr.bf16.mxu0 %v852
        %916 = vmatpush1.bf16.msra.mxu0 %v851
        %917 = vmatprep.subr.bf16.mxu0 %v854
        %918 = vmatpush1.bf16.msra.mxu0 %v853
        %919 = vmatprep.subr.bf16.mxu0 %v856
        %920 = vmatpush1.bf16.msra.mxu0 %v855
        %921 = vmatprep.subr.bf16.mxu0 %v858
        %922 = vmatpush1.bf16.msra.mxu0 %v857
        %923 = vmatprep.subr.bf16.mxu0 %v860
        %924 = vmatpush1.bf16.msra.mxu0 %v859
        %925 = vmatprep.subr.bf16.mxu0 %v862
        %926 = vmatpush1.bf16.msra.mxu0 %v861
        %927 = vmatprep.subr.bf16.mxu0 %v864
        %928 = vmatpush1.bf16.msra.mxu0 %v863
        %929 = vmatprep.subr.bf16.mxu0 %v866
        %930 = vmatpush1.bf16.msra.mxu0 %v865
        %931 = vmatprep.subr.bf16.mxu0 %v868
        %932 = vmatpush1.bf16.msra.mxu0 %v867
        %933 = vmatprep.subr.bf16.mxu0 %v870
        %934 = vmatpush1.bf16.msra.mxu0 %v869
        %935 = vmatprep.subr.bf16.mxu0 %v872
        %936 = vmatpush1.bf16.msra.mxu0 %v871
        %937 = vmatprep.subr.bf16.mxu0 %v874
        %938 = vmatpush1.bf16.msra.mxu0 %v873
        %939 = vmatprep.subr.bf16.mxu0 %v876
        %940 = vmatpush1.bf16.msra.mxu0 %v875
        %941 = vmatprep.mubr.bf16.mxu0 %v690
        %942 = vmatmul.mubr.bf16.gmra.mrb[0].mxu0 %v689
        %v943 = vpop.f32.mrb[0].mxu0
        %v944 = vadd.f32 %v742, %v943
        %v945 = vpop.f32.mrb[0].mxu0
        %v946 = vadd.f32 %v746, %v945
        %v947 = vpop.f32.mrb[0].mxu0
        %v948 = vadd.f32 %v742, %v947
        %v949 = vpop.f32.mrb[0].mxu0
        %v950 = vadd.f32 %v746, %v949
        %951 = vmatprep.mubr.bf16.mxu0 %v692
        %952 = vmatmul.mubr.bf16.gmra.mrb[0].mxu0 %v691
        %v953 = vpop.f32.mrb[0].mxu0
        %v954 = vadd.f32 %v742, %v953
        %v955 = vpop.f32.mrb[0].mxu0
        %v956 = vadd.f32 %v746, %v955
        %v957 = vpop.f32.mrb[0].mxu0
        %v958 = vadd.f32 %v742, %v957
        %v959 = vpop.f32.mrb[0].mxu0
        %v960 = vadd.f32 %v746, %v959
        %961 = vmatprep.mubr.bf16.mxu0 %v694
        %962 = vmatmul.mubr.bf16.gmra.mrb[0].mxu0 %v693
        %v963 = vpop.f32.mrb[0].mxu0
        %v964 = vadd.f32 %v742, %v963
        %v965 = vpop.f32.mrb[0].mxu0
        %v966 = vadd.f32 %v746, %v965
        %v967 = vpop.f32.mrb[0].mxu0
        %v968 = vadd.f32 %v742, %v967
        %v969 = vpop.f32.mrb[0].mxu0
        %v970 = vadd.f32 %v746, %v969
        %971 = vmatprep.mubr.bf16.mxu0 %v696
        %972 = vmatmul.mubr.bf16.gmra.mrb[0].mxu0 %v695
        %v973 = vpop.f32.mrb[0].mxu0
        %v974 = vadd.f32 %v742, %v973
        %v975 = vpop.f32.mrb[0].mxu0
        %v976 = vadd.f32 %v746, %v975
        %v977 = vpop.f32.mrb[0].mxu0
        %v978 = vadd.f32 %v742, %v977
        %v979 = vpop.f32.mrb[0].mxu0
        %v980 = vadd.f32 %v746, %v979
        %981 = vmatprep.mubr.bf16.mxu0 %v698
        %982 = vmatmul.mubr.bf16.gmra.mrb[0].mxu0 %v697
        %v983 = vpop.f32.mrb[0].mxu0
        %v984 = vadd.f32 %v742, %v983
        %v985 = vpop.f32.mrb[0].mxu0
        %v986 = vadd.f32 %v746, %v985
        %v987 = vpop.f32.mrb[0].mxu0
        %v988 = vadd.f32 %v742, %v987
        %v989 = vpop.f32.mrb[0].mxu0
        %v990 = vadd.f32 %v746, %v989
        %991 = vmatprep.mubr.bf16.mxu0 %v700
        %992 = vmatmul.mubr.bf16.gmra.mrb[0].mxu0 %v699
        %v993 = vpop.f32.mrb[0].mxu0
        %v994 = vadd.f32 %v742, %v993
        %v995 = vpop.f32.mrb[0].mxu0
        %v996 = vadd.f32 %v746, %v995
        %v997 = vpop.f32.mrb[0].mxu0
        %v998 = vadd.f32 %v742, %v997
        %v999 = vpop.f32.mrb[0].mxu0
        %v1000 = vadd.f32 %v746, %v999
        %1001 = vmatprep.mubr.bf16.mxu0 %v702
        %1002 = vmatmul.mubr.bf16.gmra.mrb[0].mxu0 %v701
        %v1003 = vpop.f32.mrb[0].mxu0
        %v1004 = vadd.f32 %v742, %v1003
        %v1005 = vpop.f32.mrb[0].mxu0
        %v1006 = vadd.f32 %v746, %v1005
        %v1007 = vpop.f32.mrb[0].mxu0
        %v1008 = vadd.f32 %v742, %v1007
        %v1009 = vpop.f32.mrb[0].mxu0
        %v1010 = vadd.f32 %v746, %v1009
        %1011 = vmatprep.mubr.bf16.mxu0 %v704
        %1012 = vmatmul.mubr.bf16.gmra.mrb[0].mxu0 %v703
        %v1013 = vpop.f32.mrb[0].mxu0
        %v1014 = vadd.f32 %v742, %v1013
        %v1015 = vpop.f32.mrb[0].mxu0
        %v1016 = vadd.f32 %v746, %v1015
        %v1017 = vpop.f32.mrb[0].mxu0
        %v1018 = vadd.f32 %v742, %v1017
        %v1019 = vpop.f32.mrb[0].mxu0
        %v1020 = vadd.f32 %v746, %v1019
        %1021 = vdwg.mxu0
        %v1022 = vmax.f32 %v944, 0.0
        %v1023 = vmax.f32 %v946, 0.0
        %v1024 = vmax.f32 %v948, 0.0
        %v1025 = vmax.f32 %v950, 0.0
        %v1026 = vmax.f32 %v954, 0.0
        %v1027 = vmax.f32 %v956, 0.0
        %v1028 = vmax.f32 %v958, 0.0
        %v1029 = vmax.f32 %v960, 0.0
        %v1030 = vmax.f32 %v964, 0.0
        %v1031 = vmax.f32 %v966, 0.0
        %v1032 = vmax.f32 %v968, 0.0
        %v1033 = vmax.f32 %v970, 0.0
        %v1034 = vmax.f32 %v974, 0.0
        %v1035 = vmax.f32 %v976, 0.0
        %v1036 = vmax.f32 %v978, 0.0
        %v1037 = vmax.f32 %v980, 0.0
        %v1038 = vmax.f32 %v984, 0.0
        %v1039 = vmax.f32 %v986, 0.0
        %v1040 = vmax.f32 %v988, 0.0
        %v1041 = vmax.f32 %v990, 0.0
        %v1042 = vmax.f32 %v994, 0.0
        %v1043 = vmax.f32 %v996, 0.0
        %v1044 = vmax.f32 %v998, 0.0
        %v1045 = vmax.f32 %v1000, 0.0
        %v1046 = vmax.f32 %v1004, 0.0
        %v1047 = vmax.f32 %v1006, 0.0
        %v1048 = vmax.f32 %v1008, 0.0
        %v1049 = vmax.f32 %v1010, 0.0
        %v1050 = vmax.f32 %v1014, 0.0
        %v1051 = vmax.f32 %v1016, 0.0
        %v1052 = vmax.f32 %v1018, 0.0
        %v1053 = vmax.f32 %v1020, 0.0
        %v1054 = vadd.f32 %v292, %v1022
        %v1055 = vadd.f32 %v293, %v1023
        %v1056 = vadd.f32 %v294, %v1024
        %v1057 = vadd.f32 %v295, %v1025
        %v1058 = vadd.f32 %v296, %v1026
        %v1059 = vadd.f32 %v297, %v1027
        %v1060 = vadd.f32 %v298, %v1028
        %v1061 = vadd.f32 %v299, %v1029
        %v1062 = vadd.f32 %v300, %v1030
        %v1063 = vadd.f32 %v301, %v1031
        %v1064 = vadd.f32 %v302, %v1032
        %v1065 = vadd.f32 %v303, %v1033
        %v1066 = vadd.f32 %v304, %v1034
        %v1067 = vadd.f32 %v305, %v1035
        %v1068 = vadd.f32 %v306, %v1036
        %v1069 = vadd.f32 %v307, %v1037
        %v1070 = vadd.f32 %v308, %v1038
        %v1071 = vadd.f32 %v309, %v1039
        %v1072 = vadd.f32 %v310, %v1040
        %v1073 = vadd.f32 %v311, %v1041
        %v1074 = vadd.f32 %v312, %v1042
        %v1075 = vadd.f32 %v313, %v1043
        %v1076 = vadd.f32 %v314, %v1044
        %v1077 = vadd.f32 %v315, %v1045
        %v1078 = vadd.f32 %v316, %v1046
        %v1079 = vadd.f32 %v317, %v1047
        %v1080 = vadd.f32 %v318, %v1048
        %v1081 = vadd.f32 %v319, %v1049
        %v1082 = vadd.f32 %v320, %v1050
        %v1083 = vadd.f32 %v321, %v1051
        %v1084 = vadd.f32 %v322, %v1052
        %v1085 = vadd.f32 %v323, %v1053
        %1086 = vst [vmem:[%s279] sm:$0xff] %v1054
        %1087 = vst [vmem:[%s279 + $0x8] sm:$0xff] %v1055
        %1088 = vst [vmem:[%s279 + $0x10] sm:$0xff] %v1056
        %1089 = vst [vmem:[%s279 + $0x18] sm:$0xff] %v1057
        %1090 = vst [vmem:[%s279 + $0x20] sm:$0xff] %v1058
        %1091 = vst [vmem:[%s279 + $0x28] sm:$0xff] %v1059
        %1092 = vst [vmem:[%s279 + $0x30] sm:$0xff] %v1060
        %1093 = vst [vmem:[%s279 + $0x38] sm:$0xff] %v1061
        %1094 = vst [vmem:[%s279 + $0x40] sm:$0xff] %v1062
        %1095 = vst [vmem:[%s279 + $0x48] sm:$0xff] %v1063
        %1096 = vst [vmem:[%s279 + $0x50] sm:$0xff] %v1064
        %1097 = vst [vmem:[%s279 + $0x58] sm:$0xff] %v1065
        %1098 = vst [vmem:[%s279 + $0x60] sm:$0xff] %v1066
        %1099 = vst [vmem:[%s279 + $0x68] sm:$0xff] %v1067
        %1100 = vst [vmem:[%s279 + $0x70] sm:$0xff] %v1068
        %1101 = vst [vmem:[%s279 + $0x78] sm:$0xff] %v1069
        %1102 = vst [vmem:[%s279 + $0x80] sm:$0xff] %v1070
        %1103 = vst [vmem:[%s279 + $0x88] sm:$0xff] %v1071
        %1104 = vst [vmem:[%s279 + $0x90] sm:$0xff] %v1072
        %1105 = vst [vmem:[%s279 + $0x98] sm:$0xff] %v1073
        %1106 = vst [vmem:[%s279 + $0xa0] sm:$0xff] %v1074
        %1107 = vst [vmem:[%s279 + $0xa8] sm:$0xff] %v1075
        %1108 = vst [vmem:[%s279 + $0xb0] sm:$0xff] %v1076
        %1109 = vst [vmem:[%s279 + $0xb8] sm:$0xff] %v1077
        %1110 = vst [vmem:[%s279 + $0xc0] sm:$0xff] %v1078
        %1111 = vst [vmem:[%s279 + $0xc8] sm:$0xff] %v1079
        %1112 = vst [vmem:[%s279 + $0xd0] sm:$0xff] %v1080
        %1113 = vst [vmem:[%s279 + $0xd8] sm:$0xff] %v1081
        %1114 = vst [vmem:[%s279 + $0xe0] sm:$0xff] %v1082
        %1115 = vst [vmem:[%s279 + $0xe8] sm:$0xff] %v1083
        %1116 = vst [vmem:[%s279 + $0xf0] sm:$0xff] %v1084
        %1117 = vst [vmem:[%s279 + $0xf8] sm:$0xff] %v1085
        %s1118 = sand.u32 %s141, 1
        %s1119 = scalar_lea.sflag [#allocation4], %s1118
        %s1120 = sand.u32 %s141, 1
        %s1121 = smul.addr %s1120, 256
        %s1122 = scalar_lea.vmem [#allocation8], %s1121
        // Predicated region
        $region53: #{tpu_custom_call.1} parent=39 // pred_check
          %p1123 = pneg %p151
        $region54: #{tpu_custom_call.1} parent=39 // pred_check_branch
          %1125 = sbr.rel (%p1123) target = $region56
        $region55: #{tpu_custom_call.1} parent=39 // pred_region
          %s1126 = smul.u32 16, %s23
          %s1127 = ssub.s32 38, %s1126
          %p1128 = scmp.lt.s32.totalorder %s1127, 16
          %s1129 = scalar_select %p1128, %s1127, 16
          %s1130 = smul.u32 128, %s1129
          %s1131 = smul.u32 %s1130, 2
          %s1133 = ssub.s32 4096, %s1131
          %1134 = vsyncadd %s1119, %s1133
          %p1135 = scmp.ne.s32.totalorder 0, %s1131
          %s1136 = smul.addr %s1126, 2
          %s1137 = smul.addr %s1136, 128
          %s1138 = scalar_lea.hbm %s5, %s1137
          %s1139 = smul.u32 16, %s1129
          %s1140 = sshll.u32 %s1122, 4
          %s1141 = int_to_ptr.vmem [resolvable:$true] %s1140
          %s1142 = sshll.u32 %s1139, 4
          %1146 = dma.vmem_to_hbm [thread:$0]  (%p1135), %s1141, %s1142, %s1138, %s1119, 256, 256, 16
        $region56: #{tpu_custom_call.1} parent=39 // pred_fallthru
          _
      $region40: #{tpu_custom_call.1} parent=5 // pred_fallthru
        _
      %p1147 = scmp.le.s32.totalorder 2, %s18
      // Predicated region
      $region57: #{tpu_custom_call.1} parent=5 // pred_check
        %p1148 = pneg %p1147
      $region58: #{tpu_custom_call.1} parent=5 // pred_check_branch
        %1150 = sbr.rel (%p1148) target = $region60
      $region59: #{tpu_custom_call.1} parent=5 // pred_region
        %s1151 = ssub.s32 %s18, 2
        // Predicated region
        $region61: #{tpu_custom_call.1} parent=59 // pred_check
          %p1152 = pneg %p157
        $region62: #{tpu_custom_call.1} parent=59 // pred_check_branch
          %1154 = sbr.rel (%p1152) target = $region64
        $region63: #{tpu_custom_call.1} parent=59 // pred_region
          %s1155 = sand.u32 %s142, 1
          %s1156 = scalar_lea.sflag [#allocation4], %s1155
          %s1157 = sand.u32 %s142, 1
          %s1158 = smul.addr %s1157, 256
          %s1159 = scalar_lea.vmem [#allocation8], %s1158
          %1160 = dma.done %s1156, 4096
        $region64: #{tpu_custom_call.1} parent=59 // pred_fallthru
          _
      $region60: #{tpu_custom_call.1} parent=5 // pred_fallthru
        _
    $region6: #{tpu_custom_call.1} parent=1 // loop_footer
      %s22 = sadd.s32 1, %s18
    $region7: #{tpu_custom_call.1} parent=1 // loop_footer_branch
      %17 = sbr.rel target = $region3
    $region8: #{tpu_custom_call.1} parent=1 // loop_exit
      _
    %1161 = vsyncpa [#allocation3], 1
    %s1162 = scalar_lea.sflag [#allocation3], 1
    %1163 = vsyncpa %s1162, 1
    %1164 = vsyncpa [#allocation6], 1
    %1165 = vsyncpa [#allocation4], 1
    %s1166 = scalar_lea.sflag [#allocation4], 1
    %1167 = vsyncpa %s1166, 1

</llo_original>
